<compile_context>
chip_gen: v6e
topology: v6e:2x2x1
jax: 0.10.0
libtpu: 0.0.40
codegen_flags: <defaults>
</compile_context>

<pallas_src>
import functools

import jax
import jax.numpy as jnp
from jax import lax
from jax.experimental import pallas as pl
from jax.experimental.pallas import tpu as pltpu


# ----------------------------------------------------------------------------
# Kernel
# ----------------------------------------------------------------------------
def _layernorm_kernel(x_ref, g_ref, b_ref, o_ref, *, eps, inv_h, inv_hm1):
    x = x_ref[...].astype(jnp.float32)                       # [TM, H]
    mu = jnp.sum(x, axis=-1, keepdims=True) * inv_h          # mean over real H
    d = x - mu
    var = jnp.sum(d * d, axis=-1, keepdims=True) * inv_hm1   # unbiased (N-1)
    # 1 / max(sqrt(var), eps) == min(rsqrt(var), 1/eps) -> EUP rsqrt, no divide.
    inv_sigma = jnp.minimum(lax.rsqrt(var), 1.0 / eps)
    y = d * inv_sigma * g_ref[...] + b_ref[...]
    o_ref[...] = y.astype(o_ref.dtype)


# ----------------------------------------------------------------------------
# Tiling heuristic
# ----------------------------------------------------------------------------
def _choose_block_rows(M, H):
    """Row-tile size: ~8 MiB (f32-equivalent) per buffer, but keep >= ~8 grid
    steps on large inputs so the pipeline/megacore sharding has work to
    balance.  Multiple of 16 so f32 (8) and bf16 (16) sublane packing both
    hold; fall back to the full row extent when M is small."""
    bytes_per_row = H * 4                       # in-kernel f32 intermediates
    tm = (8 * 1024 * 1024) // max(bytes_per_row, 1)
    tm = min(tm, -(-M // 8))                    # >= ~8 grid steps when M large
    tm = max(16, (tm // 16) * 16)
    if tm >= M:
        return M                                # single full-extent block
    return tm


# ----------------------------------------------------------------------------
# Wrapper
# ----------------------------------------------------------------------------
def layer_norm(x, gamma, beta, eps=1e-6, *, block_rows=None):
    """LayerNorm over the last axis of x (any leading shape).  Matches the
    PyTorch module: unbiased std, sigma clamped at eps."""
    orig_shape = x.shape
    H = int(orig_shape[-1])
    M = 1
    for s in orig_shape[:-1]:
        M *= int(s)
    x2 = x.reshape(M, H)

    TM = block_rows if block_rows is not None else _choose_block_rows(M, H)
    grid = (pl.cdiv(M, TM),)

    g2 = gamma.astype(jnp.float32).reshape(1, H)
    b2 = beta.astype(jnp.float32).reshape(1, H)

    out = pl.pallas_call(
        functools.partial(
            _layernorm_kernel,
            eps=float(eps),
            inv_h=1.0 / float(H),
            inv_hm1=1.0 / float(max(H - 1, 1)),
        ),
        out_shape=jax.ShapeDtypeStruct((M, H), x.dtype),
        grid_spec=pltpu.PrefetchScalarGridSpec(
            num_scalar_prefetch=0,
            grid=grid,
            in_specs=[
                pl.BlockSpec((TM, H), lambda i: (i, 0)),   # x tile (pipelined)
                pl.BlockSpec((1, H), lambda i: (0, 0)),    # gamma (resident)
                pl.BlockSpec((1, H), lambda i: (0, 0)),    # beta  (resident)
            ],
            out_specs=pl.BlockSpec((TM, H), lambda i: (i, 0)),
        ),
        compiler_params=pltpu.CompilerParams(
            dimension_semantics=("parallel",),             # megacore sharding
            vmem_limit_bytes=48 * 1024 * 1024,             # v7x-safe (64 MiB phys)
        ),
    )(x2, g2, b2)
    return out.reshape(orig_shape)


# ----------------------------------------------------------------------------
# Main
# ----------------------------------------------------------------------------
if __name__ == "__main__":
    key = jax.random.PRNGKey(0)
    k1, k2, k3, k4, k5 = jax.random.split(key, 5)

    def ln_ref(x, g, b, eps=1e-6):
        x = x.astype(jnp.float32)
        mu = jnp.mean(x, axis=-1, keepdims=True)
        d = x - mu
        var = jnp.sum(d * d, axis=-1, keepdims=True) / float(max(x.shape[-1] - 1, 1))
        sigma = jnp.maximum(jnp.sqrt(var), eps)
        return d / sigma * g + b

    # Case 1: shapes the module is used with in the model: [B, L, hidden]=32.
    B, L, H = 2, 8, 32
    x = jax.random.normal(k1, (B, L, H), jnp.float32)
    g = 1.0 + 0.1 * jax.random.normal(k2, (H,), jnp.float32)
    b = 0.1 * jax.random.normal(k3, (H,), jnp.float32)
    y = jax.block_until_ready(layer_norm(x, g, b))
    y_ref = ln_ref(x, g, b)
    assert y.shape == x.shape
    assert bool(jnp.all(jnp.isfinite(y)))
    assert float(jnp.max(jnp.abs(y - y_ref))) < 1e-3, float(jnp.max(jnp.abs(y - y_ref)))

    # Case 2: enough rows to exercise the tiled, double-buffered grid (8 steps).
    M2, H2 = 4096, 256
    x2 = jax.random.normal(k4, (M2, H2), jnp.float32)
    g2 = 1.0 + 0.05 * jax.random.normal(k2, (H2,), jnp.float32)
    b2 = 0.05 * jax.random.normal(k3, (H2,), jnp.float32)
    y2 = jax.block_until_ready(layer_norm(x2, g2, b2))
    y2_ref = ln_ref(x2, g2, b2)
    assert bool(jnp.all(jnp.isfinite(y2)))
    assert float(jnp.max(jnp.abs(y2 - y2_ref))) < 1e-3, float(jnp.max(jnp.abs(y2 - y2_ref)))

    # Case 3: bf16 activations with non-8/128-aligned M and H: partial last
    # row-block (never written back) and a full-extent (non-128-multiple) H
    # block — no HBM-side pad/slice anywhere.
    M3, H3 = 1000, 96
    x3 = jax.random.normal(k5, (M3, H3), jnp.float32).astype(jnp.bfloat16)
    g3 = jnp.ones((H3,), jnp.float32)
    b3 = jnp.zeros((H3,), jnp.float32)
    y3 = jax.block_until_ready(layer_norm(x3, g3, b3))
    assert y3.dtype == jnp.bfloat16
    y3f = y3.astype(jnp.float32)
    y3_ref = ln_ref(x3, g3, b3)
    assert bool(jnp.all(jnp.isfinite(y3f)))
    assert float(jnp.max(jnp.abs(y3f - y3_ref))) < 5e-2, float(jnp.max(jnp.abs(y3f - y3_ref)))

    print("KERNEL_OK")
</pallas_src>

<mosaic_0001>
module attributes {stable_mosaic.version = 11 : i64} {
  func.func @_layernorm_kernel(%arg0: i32, %arg1: memref<16x32xf32, #tpu.memory_space<vmem>>, %arg2: memref<1x32xf32, #tpu.memory_space<vmem>>, %arg3: memref<1x32xf32, #tpu.memory_space<vmem>>, %arg4: memref<16x32xf32, #tpu.memory_space<vmem>>) attributes {dimension_semantics = [#tpu.dimension_semantics<parallel>], iteration_bounds = array<i64: 1>, scalar_prefetch = 0 : i64, scratch_operands = 0 : i64, tpu.core_type = #tpu.core_type<tc>, window_params = [{transform_indices = @transform_0, window_bounds = array<i64: 16, 32>}, {pipeline_mode = #tpu.pipeline_mode<synchronous>, transform_indices = @transform_1, window_bounds = array<i64: 1, 32>}, {pipeline_mode = #tpu.pipeline_mode<synchronous>, transform_indices = @transform_2, window_bounds = array<i64: 1, 32>}, {transform_indices = @transform_3, window_bounds = array<i64: 16, 32>}]} {
    %c0 = arith.constant 0 : index
    %c0_0 = arith.constant 0 : index
    %0 = vector.load %arg1[%c0, %c0_0] : memref<16x32xf32, #tpu.memory_space<vmem>>, vector<16x32xf32>
    %cst = arith.constant dense<0.000000e+00> : vector<16xf32>
    %1 = vector.multi_reduction <add>, %0, %cst [1] : vector<16x32xf32> to vector<16xf32>
    %2 = vector.shape_cast %1 : vector<16xf32> to vector<16x1xf32>
    %cst_1 = arith.constant 3.125000e-02 : f32
    %3 = vector.broadcast %cst_1 : f32 to vector<16x1xf32>
    %4 = arith.mulf %2, %3 : vector<16x1xf32>
    %5 = vector.broadcast %4 : vector<16x1xf32> to vector<16x32xf32>
    %6 = arith.subf %0, %5 : vector<16x32xf32>
    %7 = arith.mulf %6, %6 : vector<16x32xf32>
    %cst_2 = arith.constant dense<0.000000e+00> : vector<16xf32>
    %8 = vector.multi_reduction <add>, %7, %cst_2 [1] : vector<16x32xf32> to vector<16xf32>
    %9 = vector.shape_cast %8 : vector<16xf32> to vector<16x1xf32>
    %cst_3 = arith.constant 0.0322580636 : f32
    %10 = vector.broadcast %cst_3 : f32 to vector<16x1xf32>
    %11 = arith.mulf %9, %10 : vector<16x1xf32>
    %12 = math.rsqrt %11 : vector<16x1xf32>
    %cst_4 = arith.constant 1.000000e+06 : f32
    %13 = vector.broadcast %cst_4 : f32 to vector<16x1xf32>
    %14 = arith.minimumf %12, %13 : vector<16x1xf32>
    %15 = vector.broadcast %14 : vector<16x1xf32> to vector<16x32xf32>
    %16 = arith.mulf %6, %15 : vector<16x32xf32>
    %c0_5 = arith.constant 0 : index
    %c0_6 = arith.constant 0 : index
    %17 = vector.load %arg2[%c0_5, %c0_6] : memref<1x32xf32, #tpu.memory_space<vmem>>, vector<1x32xf32>
    %18 = vector.broadcast %17 : vector<1x32xf32> to vector<16x32xf32>
    %19 = arith.mulf %16, %18 : vector<16x32xf32>
    %c0_7 = arith.constant 0 : index
    %c0_8 = arith.constant 0 : index
    %20 = vector.load %arg3[%c0_7, %c0_8] : memref<1x32xf32, #tpu.memory_space<vmem>>, vector<1x32xf32>
    %21 = vector.broadcast %20 : vector<1x32xf32> to vector<16x32xf32>
    %22 = arith.addf %19, %21 : vector<16x32xf32>
    %c0_9 = arith.constant 0 : index
    %c0_10 = arith.constant 0 : index
    %23 = vector.load %arg4[%c0_9, %c0_10] : memref<16x32xf32, #tpu.memory_space<vmem>>, vector<16x32xf32>
    tpu.vector_store %arg4[%c0_9, %c0_10], %22 {strides = array<i32>} : memref<16x32xf32, #tpu.memory_space<vmem>>, vector<16x32xf32>,
    return
  }
  func.func @transform_0(%arg0: i32) -> (i32, i32) {
    %c0_i32 = arith.constant 0 : i32
    %c0_i32_0 = arith.constant 0 : i32
    return %arg0, %c0_i32 : i32, i32
  }
  func.func @transform_1(%arg0: i32) -> (i32, i32) {
    %c0_i32 = arith.constant 0 : i32
    %c0_i32_0 = arith.constant 0 : i32
    %c0_i32_1 = arith.constant 0 : i32
    return %c0_i32, %c0_i32_0 : i32, i32
  }
  func.func @transform_2(%arg0: i32) -> (i32, i32) {
    %c0_i32 = arith.constant 0 : i32
    %c0_i32_0 = arith.constant 0 : i32
    %c0_i32_1 = arith.constant 0 : i32
    return %c0_i32, %c0_i32_0 : i32, i32
  }
  func.func @transform_3(%arg0: i32) -> (i32, i32) {
    %c0_i32 = arith.constant 0 : i32
    %c0_i32_0 = arith.constant 0 : i32
    return %arg0, %c0_i32 : i32, i32
  }
}

</mosaic_0001>

<llo_original>
// kernel: tpu_custom_call.1
$region0: #{tpu_custom_call.1}
  #allocation0 [shape = 'u32[]', space=smem, size = 0x4, offset = 0x4, fixed_abs, tag = 'smem constant byte address 0x4 - core index']
  #allocation1 [shape = 'u32[144,128]{1,0:T(1,128)}', space=vmem, size = 0x12000, scoped, tag = 'internal scratch']
  %s0 = inlined_call_operand.hbm [shape: f32[16,32], index: 0, kind: input, shape index: {}]
  %s1 = inlined_call_operand.vmem [shape: f32[1,32], index: 1, kind: input, shape index: {}]
  %s2 = inlined_call_operand.vmem [shape: f32[1,32], index: 2, kind: input, shape index: {}]
  %s3 = inlined_call_operand.hbm [shape: f32[16,32], index: 3, kind: output, shape index: {}]
  %s4 = sld [smem:[#allocation0]]
  $region26: #{tpu_custom_call.1} parent=0
    _
  %s6 = ssub.s32 1, %s4
  %s7 = scalar_select 0, %s6, %s4
  $region1: #{tpu_custom_call.1} parent=0
    #allocation2 [shape = 'u8[8192]{0}', space=vmem, size = 0x2000, scoped, tag = 'input window, operand 0, single buffered']
    #allocation3 [shape = 's32[1]{0}', space=sflag, size = 0x4, scoped, tag = 'scoped memory for tpu_custom_call.1']
    #allocation4 [shape = 's32[1]{0}', space=sflag, size = 0x4, scoped, tag = 'scoped memory for tpu_custom_call.1']
    #allocation5 [shape = 'u8[8192]{0}', space=vmem, size = 0x2000, scoped, tag = 'output window, operand 0, single buffered']
    %8 = vsyncpa [#allocation3], 0
    %9 = vsyncpa [#allocation4], 0
    // Predicated region
    $region2: #{tpu_custom_call.1} parent=1 // pred_check
      _
    $region3: #{tpu_custom_call.1} parent=1 // pred_check_branch
      %11 = sbr.rel (0) target = $region5
    $region4: #{tpu_custom_call.1} parent=1 // pred_region
      %s13 = ssub.s32 256, 256
      %14 = vsyncadd [#allocation3], %s13
      %s15 = sshll.u32 [#allocation2], 4
      %s16 = int_to_ptr.vmem [resolvable:$true] %s15
      %21 = dma.hbm_to_vmem [thread:$0]  %s0, 256, %s16, [#allocation3], 128, 128, 8
    $region5: #{tpu_custom_call.1} parent=1 // pred_fallthru
      _
    // Predicated region
    $region6: #{tpu_custom_call.1} parent=1 // pred_check
      _
    $region7: #{tpu_custom_call.1} parent=1 // pred_check_branch
      %23 = sbr.rel (0) target = $region9
    $region8: #{tpu_custom_call.1} parent=1 // pred_region
      _
    $region9: #{tpu_custom_call.1} parent=1 // pred_fallthru
      _
    // Predicated region
    $region10: #{tpu_custom_call.1} parent=1 // pred_check
      _
    $region11: #{tpu_custom_call.1} parent=1 // pred_check_branch
      %25 = sbr.rel (0) target = $region13
    $region12: #{tpu_custom_call.1} parent=1 // pred_region
      _
    $region13: #{tpu_custom_call.1} parent=1 // pred_fallthru
      _
    // Predicated region
    $region14: #{tpu_custom_call.1} parent=1 // pred_check
      _
    $region15: #{tpu_custom_call.1} parent=1 // pred_check_branch
      %27 = sbr.rel (0) target = $region17
    $region16: #{tpu_custom_call.1} parent=1 // pred_region
      %28 = dma.done [#allocation3], 256
    $region17: #{tpu_custom_call.1} parent=1 // pred_fallthru
      _
    %v29 = vld [vmem:[#allocation2] sm:$0xff]
    %v30 = vld [vmem:[#allocation2 + $0x8] sm:$0xff]
    %vm31 = vcmask 261120
    %v32 = vsel %vm31, %v29, 0.0
    %33 = vadd.xlane.f32.xlu0 %v32
    %v34 = vpop.xlane.xlu0 %33
    %v35 = vsel %vm31, %v30, 0.0
    %36 = vadd.xlane.f32.xlu0 %v35
    %v37 = vpop.xlane.xlu0 %36
    %v38 = vmul.f32 %v34, 0.03125
    %v39 = vmul.f32 %v37, 0.03125
    %v40 = vsub.f32 %v29, %v38
    %v41 = vsub.f32 %v30, %v39
    %v42 = vmul.f32 %v40, %v40
    %v43 = vmul.f32 %v41, %v41
    %v44 = vsel %vm31, %v42, 0.0
    %45 = vadd.xlane.f32.xlu0 %v44
    %v46 = vpop.xlane.xlu0 %45
    %v47 = vsel %vm31, %v43, 0.0
    %48 = vadd.xlane.f32.xlu0 %v47
    %v49 = vpop.xlane.xlu0 %48
    %v50 = vmul.f32 %v46, 0.032258064
    %v51 = vmul.f32 %v49, 0.032258064
    %v52 = vrsqrt.pop %v50
    %v53 = vrsqrt.pop %v51
    %v54 = vmin.f32 %v52, 1000000.0
    %v55 = vmin.f32 %v53, 1000000.0
    %v56 = vmul.f32 %v40, %v54
    %v57 = vmul.f32 %v41, %v55
    %v58 = vld [vmem:[%s1] sm:$0x1]
    %v60 = vlaneseq
    %v61 = vshrl.u32 %v60, 7
    %v62 = vsub.s32 0, %v61
    %v63 = vrot.slane %v58, %v62
    %v65 = vmul.f32 %v56, %v63
    %v66 = vmul.f32 %v57, %v63
    %v67 = vld [vmem:[%s2] sm:$0x1]
    %v69 = vlaneseq
    %v70 = vshrl.u32 %v69, 7
    %v71 = vsub.s32 0, %v70
    %v72 = vrot.slane %v67, %v71
    %v74 = vadd.f32 %v65, %v72
    %v75 = vadd.f32 %v66, %v72
    %76 = vst.msk [vmem:[#allocation5] sm:$0xff] %vm31, %v74
    %77 = vst.msk [vmem:[#allocation5 + $0x8] sm:$0xff] %vm31, %v75
    // Predicated region
    $region18: #{tpu_custom_call.1} parent=1 // pred_check
      _
    $region19: #{tpu_custom_call.1} parent=1 // pred_check_branch
      %79 = sbr.rel (0) target = $region21
    $region20: #{tpu_custom_call.1} parent=1 // pred_region
      %s81 = ssub.s32 256, 256
      %82 = vsyncadd [#allocation4], %s81
      %s83 = sshll.u32 [#allocation5], 4
      %s84 = int_to_ptr.vmem [resolvable:$true] %s83
      %89 = dma.vmem_to_hbm [thread:$0]  %s84, 256, %s3, [#allocation4], 128, 128, 8
    $region21: #{tpu_custom_call.1} parent=1 // pred_fallthru
      _
    // Predicated region
    $region22: #{tpu_custom_call.1} parent=1 // pred_check
      _
    $region23: #{tpu_custom_call.1} parent=1 // pred_check_branch
      %91 = sbr.rel (0) target = $region25
    $region24: #{tpu_custom_call.1} parent=1 // pred_region
      %92 = dma.done [#allocation4], 256
    $region25: #{tpu_custom_call.1} parent=1 // pred_fallthru
      _
    %93 = vsyncpa [#allocation3], 1
    %94 = vsyncpa [#allocation4], 1

</llo_original>
